<compile_context>
chip_gen: v5e
topology: v5e:2x2
jax: 0.10.0
libtpu: 0.0.40
codegen_flags: <defaults>
</compile_context>

<pallas_src>
import math
import jax
import jax.numpy as jnp
from jax.experimental import pallas as pl
from jax.experimental.pallas import tpu as pltpu


def make_attention_kernel(bt, s, d, num_heads, key_width, value_width,
                          mxu_dtype, eps=1e-5):
    hk = num_heads * key_width
    hv = num_heads * value_width
    rows = bt * s

    def kernel(x_ref, wqkv_ref, wp_ref, o_ref):
        xv = x_ref[...]                                         # (bt, s, d)
        # Exactly one cast each way: MXU-dtype copy for the matmuls, one f32
        # copy for the residual + LayerNorm.
        xm = xv if xv.dtype == mxu_dtype else xv.astype(mxu_dtype)
        xf = xv if xv.dtype == jnp.float32 else xv.astype(jnp.float32)

        # Fused QKV projection: one wide, lane-dense MXU push, f32 accumulation.
        # (1/sqrt(Kw) is already folded into the Wq columns by the wrapper.)
        qkv = jnp.dot(xm.reshape(rows, d), wqkv_ref[...],
                      preferred_element_type=jnp.float32)       # (R, 2*hk+hv)
        qkv = qkv.reshape(bt, s, 2 * hk + hv)

        q = qkv[:, :, :hk]                                      # (bt, s, hk)
        k = qkv[:, :, hk:2 * hk]                                # (bt, s, hk)
        v = qkv[:, :, 2 * hk:]                                  # (bt, s, hv)

        # Static loop over heads (H is small); each head processes all folded
        # batch rows with one batched contraction. Head outputs stay as values.
        heads = []
        for h in range(num_heads):
            qh = q[:, :, h * key_width:(h + 1) * key_width].astype(mxu_dtype)
            kh = k[:, :, h * key_width:(h + 1) * key_width].astype(mxu_dtype)
            vh = v[:, :, h * value_width:(h + 1) * value_width].astype(mxu_dtype)

            logits = jnp.einsum('bsk,btk->bst', qh, kh,
                                preferred_element_type=jnp.float32)  # (bt,s,s)
            logits = logits - jnp.max(logits, axis=-1, keepdims=True)
            p = jnp.exp(logits)                # unnormalized, in [0,1] -> safe
            l = jnp.sum(p, axis=-1, keepdims=True)               # (bt, s, 1)

            ah = jnp.einsum('bst,btv->bsv', p.astype(mxu_dtype), vh,
                            preferred_element_type=jnp.float32)  # (bt, s, Vw)
            # Normalize the small (bt,s,Vw) output, not the (bt,s,s) probs.
            inv_l = pl.reciprocal(l, approx=True)
            heads.append(ah * inv_l)

        a = jnp.concatenate(heads, axis=-1).reshape(rows, hv)    # (R, hv) f32
        proj = jnp.dot(a.astype(mxu_dtype), wp_ref[...],
                       preferred_element_type=jnp.float32)       # (R, d)

        # Residual + LayerNorm (no affine, eps=1e-5, biased variance) in f32.
        y = xf.reshape(rows, d) + proj
        mean = jnp.mean(y, axis=-1, keepdims=True)
        var = jnp.mean(jnp.square(y - mean), axis=-1, keepdims=True)
        out = (y - mean) * jax.lax.rsqrt(var + eps)
        o_ref[...] = out.reshape(bt, s, d).astype(o_ref.dtype)

    return kernel


def _vmem_capacity_bytes():
    try:
        return int(pltpu.get_tpu_info().vmem_capacity_bytes)
    except Exception:
        return 64 << 20   # most restrictive generation (v7x per-TensorCore)


def _pick_batch_tile(n, s, d, hk, hv, x_itemsize, out_itemsize, mxu_itemsize,
                     forced_bt=None):
    """Choose batch elements per grid step + a matching vmem_limit_bytes."""
    cap = _vmem_capacity_bytes()
    # Resident fused weights (single-buffered: constant block index).
    w_bytes = (d * (2 * hk + hv) + hv * d) * mxu_itemsize
    # Per-batch-element bytes of one grid step: double-buffered in/out blocks
    # plus the dominant live f32 temporaries (x copy, qkv, one head's
    # logits + exp, concatenated head outputs, proj / residual / LN).
    per_b = s * (2 * d * x_itemsize + 2 * d * out_itemsize
                 + 4 * (d + (2 * hk + hv) + 2 * s + 2 * hv + 3 * d))
    if forced_bt is None:
        budget = cap // 2                       # headroom for compiler scratch
        bt = max(1, min(n, (budget - w_bytes) // max(per_b, 1)))
        # Prefer >=4 grid steps (>=2 per v7x TensorCore, and cross-step DMA
        # overlap everywhere) -- but never at the cost of dropping the matmul
        # M dimension (bt*s) below ~256 rows (256x256 MXU fill on v6e/v7x).
        if n >= 4:
            bt_steps = max(1, n // 4)
            if bt_steps * s >= 256:
                bt = min(bt, bt_steps)
        bt = min(bt, n)
        while n % bt:
            bt -= 1
    else:
        bt = forced_bt
    est = w_bytes + bt * per_b
    vmem_limit = int(min(cap * 3 // 4, max(2 * est, 32 << 20)))
    return bt, vmem_limit


def attention_layer(x, wq_t, wk_t, wv_t, wp_t, *, num_heads, key_width,
                    value_width, mxu_dtype=None, batch_tile=None):
    """x: (n, s, D); w*_t: transposed nn.Linear weights, i.e. (in, out)."""
    n, s, d = x.shape
    hk = num_heads * key_width
    hv = num_heads * value_width
    assert wq_t.shape == (d, hk) and wk_t.shape == (d, hk)
    assert wv_t.shape == (d, hv) and wp_t.shape == (hv, d)
    if mxu_dtype is None:
        # bf16 MXU inputs with f32 accumulation by default when x is f32:
        # softmax / residual / LayerNorm stay f32 so accuracy is preserved.
        mxu_dtype = jnp.bfloat16 if x.dtype == jnp.dtype(jnp.float32) else x.dtype

    # Fuse the projection weights along the output axis (one lane-dense MXU
    # matmul), fold 1/sqrt(Kw) into the Wq columns (tiny one-time weight op,
    # removes the per-step q scale), and pre-cast to the MXU dtype so the
    # kernel never casts weights and the weight DMA bytes are halved.
    scale = 1.0 / math.sqrt(key_width)
    wqkv_t = jnp.concatenate([wq_t * scale, wk_t, wv_t], axis=1).astype(mxu_dtype)
    wp_c = wp_t.astype(mxu_dtype)

    if batch_tile is not None:
        assert n % batch_tile == 0
    bt, vmem_limit = _pick_batch_tile(
        n, s, d, hk, hv,
        x_itemsize=jnp.dtype(x.dtype).itemsize,
        out_itemsize=jnp.dtype(x.dtype).itemsize,
        mxu_itemsize=jnp.dtype(mxu_dtype).itemsize,
        forced_bt=batch_tile)
    grid = (n // bt,)

    kernel = make_attention_kernel(bt, s, d, num_heads, key_width, value_width,
                                   mxu_dtype)

    # Weight blocks: constant index_map -> fetched once and kept resident;
    # single-buffered since their block index never changes across the grid.
    def const_spec(w):
        return pl.BlockSpec(w.shape, lambda b: (0, 0),
                            pipeline_mode=pl.Buffered(1))

    return pl.pallas_call(
        kernel,
        out_shape=jax.ShapeDtypeStruct((n, s, d), x.dtype),
        grid_spec=pltpu.PrefetchScalarGridSpec(
            num_scalar_prefetch=0,
            grid=grid,
            in_specs=[
                pl.BlockSpec((bt, s, d), lambda b: (b, 0, 0)),
                const_spec(wqkv_t),
                const_spec(wp_c),
            ],
            out_specs=pl.BlockSpec((bt, s, d), lambda b: (b, 0, 0)),
        ),
        compiler_params=pltpu.CompilerParams(
            dimension_semantics=("parallel",),
            vmem_limit_bytes=vmem_limit),
    )(x, wqkv_t, wp_c)


def reference(x, wq_t, wk_t, wv_t, wp_t, *, num_heads, key_width, value_width):
    n, s, d = x.shape
    q = (x @ wq_t).reshape(n, s, num_heads, key_width)
    k = (x @ wk_t).reshape(n, s, num_heads, key_width)
    v = (x @ wv_t).reshape(n, s, num_heads, value_width)
    raw = jnp.einsum('bshe,bthe->bsth', q, k / math.sqrt(key_width))
    attn = jax.nn.softmax(raw, axis=2)
    a = jnp.einsum('bsth,bthe->bshe', attn, v).reshape(n, s, num_heads * value_width)
    p = a @ wp_t
    y = x + p
    mean = jnp.mean(y, axis=-1, keepdims=True)
    var = jnp.mean(jnp.square(y - mean), axis=-1, keepdims=True)
    return (y - mean) * jax.lax.rsqrt(var + 1e-5)


if __name__ == "__main__":
    batch, seq = 8, 8
    input_width, key_width, value_width, num_heads = 32, 8, 8, 2
    dropout = 0.0  # p == 0 path (dropout is skipped, matching torch forward)

    key = jax.random.PRNGKey(0)
    kx, kq, kk, kv, kp = jax.random.split(key, 5)
    x = jax.random.normal(kx, (batch, seq, input_width), dtype=jnp.float32)

    # torch.nn.Linear weights are (out, in); build them and pass transposed.
    wq = jax.random.normal(kq, (num_heads * key_width, input_width), jnp.float32) * 0.1
    wk = jax.random.normal(kk, (num_heads * key_width, input_width), jnp.float32) * 0.1
    wv = jax.random.normal(kv, (num_heads * value_width, input_width), jnp.float32) * 0.1
    wp = jax.random.normal(kp, (input_width, num_heads * value_width), jnp.float32) * 0.1
    wq_t, wk_t, wv_t, wp_t = wq.T, wk.T, wv.T, wp.T

    ref = reference(x, wq_t, wk_t, wv_t, wp_t,
                    num_heads=num_heads, key_width=key_width,
                    value_width=value_width)

    # Default path: bf16 MXU inputs, f32 accumulation / softmax / residual / LN.
    out = attention_layer(x, wq_t, wk_t, wv_t, wp_t,
                          num_heads=num_heads, key_width=key_width,
                          value_width=value_width)
    out = jax.block_until_ready(out)
    assert out.shape == (batch, seq, input_width)
    assert jnp.allclose(out, ref, atol=1e-1, rtol=1e-1), "bf16 path mismatch vs reference"

    # Full-precision MXU path (matches the f32 torch module; tolerance covers
    # the EUP approx-reciprocal in the softmax normalization).
    out_f32 = attention_layer(x, wq_t, wk_t, wv_t, wp_t,
                              num_heads=num_heads, key_width=key_width,
                              value_width=value_width, mxu_dtype=jnp.float32)
    out_f32 = jax.block_until_ready(out_f32)
    assert jnp.allclose(out_f32, ref, atol=5e-3, rtol=5e-3), "f32 path mismatch vs reference"

    print("KERNEL_OK")
</pallas_src>

<mosaic_0001>
module attributes {stable_mosaic.version = 11 : i64} {
  func.func @kernel(%arg0: i32, %arg1: memref<8x8x32xf32, #tpu.memory_space<vmem>>, %arg2: memref<32x48xbf16, #tpu.memory_space<vmem>>, %arg3: memref<16x32xbf16, #tpu.memory_space<vmem>>, %arg4: memref<8x8x32xf32, #tpu.memory_space<vmem>>) attributes {dimension_semantics = [#tpu.dimension_semantics<parallel>], iteration_bounds = array<i64: 1>, scalar_prefetch = 0 : i64, scratch_operands = 0 : i64, tpu.core_type = #tpu.core_type<tc>, window_params = [{transform_indices = @transform_0, window_bounds = array<i64: 8, 8, 32>}, {pipeline_mode = #tpu.pipeline_mode<synchronous>, transform_indices = @transform_1, window_bounds = array<i64: 32, 48>}, {pipeline_mode = #tpu.pipeline_mode<synchronous>, transform_indices = @transform_2, window_bounds = array<i64: 16, 32>}, {transform_indices = @transform_3, window_bounds = array<i64: 8, 8, 32>}]} {
    %c0 = arith.constant 0 : index
    %c0_0 = arith.constant 0 : index
    %c0_1 = arith.constant 0 : index
    %0 = vector.load %arg1[%c0, %c0_0, %c0_1] : memref<8x8x32xf32, #tpu.memory_space<vmem>>, vector<8x8x32xf32>
    %1 = arith.truncf %0 : vector<8x8x32xf32> to vector<8x8x32xbf16>
    %2 = vector.shape_cast %1 : vector<8x8x32xbf16> to vector<64x32xbf16>
    %c0_2 = arith.constant 0 : index
    %c0_3 = arith.constant 0 : index
    %3 = vector.load %arg2[%c0_2, %c0_3] : memref<32x48xbf16, #tpu.memory_space<vmem>>, vector<32x48xbf16>
    %cst = arith.constant dense<0.000000e+00> : vector<64x48xf32>
    %4 = tpu.matmul %2, %3, %cst {dimension_numbers = #tpu.dot_dimension_numbers<[1], [0], [0], [1], [0, 0, 1, 1], [], []>} : vector<64x32xbf16>, vector<32x48xbf16>, vector<64x48xf32> -> vector<64x48xf32>
    %5 = vector.shape_cast %4 : vector<64x48xf32> to vector<8x8x48xf32>
    %6 = vector.extract_strided_slice %5 {offsets = [0, 0, 0], sizes = [8, 8, 16], strides = [1, 1, 1]} : vector<8x8x48xf32> to vector<8x8x16xf32>
    %7 = vector.extract_strided_slice %5 {offsets = [0, 0, 16], sizes = [8, 8, 16], strides = [1, 1, 1]} : vector<8x8x48xf32> to vector<8x8x16xf32>
    %8 = vector.extract_strided_slice %5 {offsets = [0, 0, 32], sizes = [8, 8, 16], strides = [1, 1, 1]} : vector<8x8x48xf32> to vector<8x8x16xf32>
    %9 = vector.extract_strided_slice %6 {offsets = [0, 0, 0], sizes = [8, 8, 8], strides = [1, 1, 1]} : vector<8x8x16xf32> to vector<8x8x8xf32>
    %10 = arith.truncf %9 : vector<8x8x8xf32> to vector<8x8x8xbf16>
    %11 = vector.extract_strided_slice %7 {offsets = [0, 0, 0], sizes = [8, 8, 8], strides = [1, 1, 1]} : vector<8x8x16xf32> to vector<8x8x8xf32>
    %12 = arith.truncf %11 : vector<8x8x8xf32> to vector<8x8x8xbf16>
    %13 = vector.extract_strided_slice %8 {offsets = [0, 0, 0], sizes = [8, 8, 8], strides = [1, 1, 1]} : vector<8x8x16xf32> to vector<8x8x8xf32>
    %14 = arith.truncf %13 : vector<8x8x8xf32> to vector<8x8x8xbf16>
    "tpu.trace_start"() <{level = 10 : i32, message = "bsk,btk->bst"}> : () -> ()
    %cst_4 = arith.constant dense<0.000000e+00> : vector<8x8x8xf32>
    %15 = tpu.matmul %10, %12, %cst_4 {dimension_numbers = #tpu.dot_dimension_numbers<[2], [2], [1], [1], [0, 0, 0, 1, 1, 1], [0], [0]>} : vector<8x8x8xbf16>, vector<8x8x8xbf16>, vector<8x8x8xf32> -> vector<8x8x8xf32>
    "tpu.trace_stop"() : () -> ()
    %cst_5 = arith.constant dense<0xFF800000> : vector<8x8xf32>
    %16 = vector.multi_reduction <maximumf>, %15, %cst_5 [2] : vector<8x8x8xf32> to vector<8x8xf32>
    %17 = vector.shape_cast %16 : vector<8x8xf32> to vector<8x8x1xf32>
    %18 = vector.broadcast %17 : vector<8x8x1xf32> to vector<8x8x8xf32>
    %19 = arith.subf %15, %18 : vector<8x8x8xf32>
    %20 = math.exp %19 : vector<8x8x8xf32>
    %cst_6 = arith.constant dense<0.000000e+00> : vector<8x8xf32>
    %21 = vector.multi_reduction <add>, %20, %cst_6 [2] : vector<8x8x8xf32> to vector<8x8xf32>
    %22 = vector.shape_cast %21 : vector<8x8xf32> to vector<8x8x1xf32>
    %23 = arith.truncf %20 : vector<8x8x8xf32> to vector<8x8x8xbf16>
    "tpu.trace_start"() <{level = 10 : i32, message = "bst,btv->bsv"}> : () -> ()
    %cst_7 = arith.constant dense<0.000000e+00> : vector<8x8x8xf32>
    %24 = tpu.matmul %23, %14, %cst_7 {dimension_numbers = #tpu.dot_dimension_numbers<[2], [1], [1], [2], [0, 0, 0, 1, 1, 2], [0], [0]>} : vector<8x8x8xbf16>, vector<8x8x8xbf16>, vector<8x8x8xf32> -> vector<8x8x8xf32>
    "tpu.trace_stop"() : () -> ()
    %25 = tpu.reciprocal %22 {approx = true} : vector<8x8x1xf32> -> vector<8x8x1xf32>
    %26 = vector.broadcast %25 : vector<8x8x1xf32> to vector<8x8x8xf32>
    %27 = arith.mulf %24, %26 : vector<8x8x8xf32>
    %28 = vector.extract_strided_slice %6 {offsets = [0, 0, 8], sizes = [8, 8, 8], strides = [1, 1, 1]} : vector<8x8x16xf32> to vector<8x8x8xf32>
    %29 = arith.truncf %28 : vector<8x8x8xf32> to vector<8x8x8xbf16>
    %30 = vector.extract_strided_slice %7 {offsets = [0, 0, 8], sizes = [8, 8, 8], strides = [1, 1, 1]} : vector<8x8x16xf32> to vector<8x8x8xf32>
    %31 = arith.truncf %30 : vector<8x8x8xf32> to vector<8x8x8xbf16>
    %32 = vector.extract_strided_slice %8 {offsets = [0, 0, 8], sizes = [8, 8, 8], strides = [1, 1, 1]} : vector<8x8x16xf32> to vector<8x8x8xf32>
    %33 = arith.truncf %32 : vector<8x8x8xf32> to vector<8x8x8xbf16>
    "tpu.trace_start"() <{level = 10 : i32, message = "bsk,btk->bst"}> : () -> ()
    %cst_8 = arith.constant dense<0.000000e+00> : vector<8x8x8xf32>
    %34 = tpu.matmul %29, %31, %cst_8 {dimension_numbers = #tpu.dot_dimension_numbers<[2], [2], [1], [1], [0, 0, 0, 1, 1, 1], [0], [0]>} : vector<8x8x8xbf16>, vector<8x8x8xbf16>, vector<8x8x8xf32> -> vector<8x8x8xf32>
    "tpu.trace_stop"() : () -> ()
    %cst_9 = arith.constant dense<0xFF800000> : vector<8x8xf32>
    %35 = vector.multi_reduction <maximumf>, %34, %cst_9 [2] : vector<8x8x8xf32> to vector<8x8xf32>
    %36 = vector.shape_cast %35 : vector<8x8xf32> to vector<8x8x1xf32>
    %37 = vector.broadcast %36 : vector<8x8x1xf32> to vector<8x8x8xf32>
    %38 = arith.subf %34, %37 : vector<8x8x8xf32>
    %39 = math.exp %38 : vector<8x8x8xf32>
    %cst_10 = arith.constant dense<0.000000e+00> : vector<8x8xf32>
    %40 = vector.multi_reduction <add>, %39, %cst_10 [2] : vector<8x8x8xf32> to vector<8x8xf32>
    %41 = vector.shape_cast %40 : vector<8x8xf32> to vector<8x8x1xf32>
    %42 = arith.truncf %39 : vector<8x8x8xf32> to vector<8x8x8xbf16>
    "tpu.trace_start"() <{level = 10 : i32, message = "bst,btv->bsv"}> : () -> ()
    %cst_11 = arith.constant dense<0.000000e+00> : vector<8x8x8xf32>
    %43 = tpu.matmul %42, %33, %cst_11 {dimension_numbers = #tpu.dot_dimension_numbers<[2], [1], [1], [2], [0, 0, 0, 1, 1, 2], [0], [0]>} : vector<8x8x8xbf16>, vector<8x8x8xbf16>, vector<8x8x8xf32> -> vector<8x8x8xf32>
    "tpu.trace_stop"() : () -> ()
    %44 = tpu.reciprocal %41 {approx = true} : vector<8x8x1xf32> -> vector<8x8x1xf32>
    %45 = vector.broadcast %44 : vector<8x8x1xf32> to vector<8x8x8xf32>
    %46 = arith.mulf %43, %45 : vector<8x8x8xf32>
    %47 = tpu.concatenate %27, %46 in 2 : vector<8x8x8xf32>, vector<8x8x8xf32> -> vector<8x8x16xf32>
    %48 = vector.shape_cast %47 : vector<8x8x16xf32> to vector<64x16xf32>
    %49 = arith.truncf %48 : vector<64x16xf32> to vector<64x16xbf16>
    %c0_12 = arith.constant 0 : index
    %c0_13 = arith.constant 0 : index
    %50 = vector.load %arg3[%c0_12, %c0_13] : memref<16x32xbf16, #tpu.memory_space<vmem>>, vector<16x32xbf16>
    %cst_14 = arith.constant dense<0.000000e+00> : vector<64x32xf32>
    %51 = tpu.matmul %49, %50, %cst_14 {dimension_numbers = #tpu.dot_dimension_numbers<[1], [0], [0], [1], [0, 0, 1, 1], [], []>} : vector<64x16xbf16>, vector<16x32xbf16>, vector<64x32xf32> -> vector<64x32xf32>
    %52 = vector.shape_cast %0 : vector<8x8x32xf32> to vector<64x32xf32>
    %53 = arith.addf %52, %51 : vector<64x32xf32>
    %cst_15 = arith.constant dense<0.000000e+00> : vector<64xf32>
    %54 = vector.multi_reduction <add>, %53, %cst_15 [1] : vector<64x32xf32> to vector<64xf32>
    %55 = vector.shape_cast %54 : vector<64xf32> to vector<64x1xf32>
    %cst_16 = arith.constant 3.200000e+01 : f32
    %56 = vector.broadcast %cst_16 : f32 to vector<64x1xf32>
    %57 = arith.divf %55, %56 : vector<64x1xf32>
    %58 = vector.broadcast %57 : vector<64x1xf32> to vector<64x32xf32>
    %59 = arith.subf %53, %58 : vector<64x32xf32>
    %60 = arith.mulf %59, %59 : vector<64x32xf32>
    %cst_17 = arith.constant dense<0.000000e+00> : vector<64xf32>
    %61 = vector.multi_reduction <add>, %60, %cst_17 [1] : vector<64x32xf32> to vector<64xf32>
    %62 = vector.shape_cast %61 : vector<64xf32> to vector<64x1xf32>
    %cst_18 = arith.constant 3.200000e+01 : f32
    %63 = vector.broadcast %cst_18 : f32 to vector<64x1xf32>
    %64 = arith.divf %62, %63 : vector<64x1xf32>
    %65 = vector.broadcast %57 : vector<64x1xf32> to vector<64x32xf32>
    %66 = arith.subf %53, %65 : vector<64x32xf32>
    %cst_19 = arith.constant 9.99999974E-6 : f32
    %67 = vector.broadcast %cst_19 : f32 to vector<64x1xf32>
    %68 = arith.addf %64, %67 : vector<64x1xf32>
    %69 = math.rsqrt %68 : vector<64x1xf32>
    %70 = vector.broadcast %69 : vector<64x1xf32> to vector<64x32xf32>
    %71 = arith.mulf %66, %70 : vector<64x32xf32>
    %72 = vector.shape_cast %71 : vector<64x32xf32> to vector<8x8x32xf32>
    %c0_20 = arith.constant 0 : index
    %c0_21 = arith.constant 0 : index
    %c0_22 = arith.constant 0 : index
    %73 = vector.load %arg4[%c0_20, %c0_21, %c0_22] : memref<8x8x32xf32, #tpu.memory_space<vmem>>, vector<8x8x32xf32>
    tpu.vector_store %arg4[%c0_20, %c0_21, %c0_22], %72 {strides = array<i32>} : memref<8x8x32xf32, #tpu.memory_space<vmem>>, vector<8x8x32xf32>,
    return
  }
  func.func @transform_0(%arg0: i32) -> (i32, i32, i32) {
    %c0_i32 = arith.constant 0 : i32
    %c0_i32_0 = arith.constant 0 : i32
    %c0_i32_1 = arith.constant 0 : i32
    return %arg0, %c0_i32, %c0_i32_0 : i32, i32, i32
  }
  func.func @transform_1(%arg0: i32) -> (i32, i32) {
    %c0_i32 = arith.constant 0 : i32
    %c0_i32_0 = arith.constant 0 : i32
    %c0_i32_1 = arith.constant 0 : i32
    return %c0_i32, %c0_i32_0 : i32, i32
  }
  func.func @transform_2(%arg0: i32) -> (i32, i32) {
    %c0_i32 = arith.constant 0 : i32
    %c0_i32_0 = arith.constant 0 : i32
    %c0_i32_1 = arith.constant 0 : i32
    return %c0_i32, %c0_i32_0 : i32, i32
  }
  func.func @transform_3(%arg0: i32) -> (i32, i32, i32) {
    %c0_i32 = arith.constant 0 : i32
    %c0_i32_0 = arith.constant 0 : i32
    %c0_i32_1 = arith.constant 0 : i32
    return %arg0, %c0_i32, %c0_i32_0 : i32, i32, i32
  }
}

</mosaic_0001>

<llo_original>
// kernel: tpu_custom_call.1
$region0: #{tpu_custom_call.1}
  #allocation0 [shape = 'u32[]', space=smem, size = 0x4, offset = 0x4, fixed_abs, tag = 'smem constant byte address 0x4 - core index']
  #allocation1 [shape = 'u32[72,128]{1,0:T(1,128)}', space=vmem, size = 0x9000, scoped, tag = 'internal scratch']
  %s0 = inlined_call_operand.hbm [shape: f32[8,8,32], index: 0, kind: input, shape index: {}]
  %s1 = inlined_call_operand.hbm [shape: bf16[32,48], index: 1, kind: input, shape index: {}]
  %s2 = inlined_call_operand.hbm [shape: bf16[16,32], index: 2, kind: input, shape index: {}]
  %s3 = inlined_call_operand.hbm [shape: f32[8,8,32], index: 3, kind: output, shape index: {}]
  %s4 = sld [smem:[#allocation0]]
  $region34: #{tpu_custom_call.1} parent=0
    _
  %s6 = ssub.s32 1, %s4
  %s7 = scalar_select 0, %s6, %s4
  $region1: #{tpu_custom_call.1} parent=0
    #allocation2 [shape = 'u8[32768]{0}', space=vmem, size = 0x8000, scoped, tag = 'input window, operand 0, single buffered']
    #allocation3 [shape = 's32[1]{0}', space=sflag, size = 0x4, scoped, tag = 'scoped memory for tpu_custom_call.1']
    #allocation4 [shape = 's32[1]{0}', space=sflag, size = 0x4, scoped, tag = 'scoped memory for tpu_custom_call.1']
    #allocation5 [shape = 'u8[8192]{0}', space=vmem, size = 0x2000, scoped, tag = 'input window, operand 1, single buffered']
    #allocation6 [shape = 's32[1]{0}', space=sflag, size = 0x4, scoped, tag = 'scoped memory for tpu_custom_call.1']
    #allocation7 [shape = 'u8[4096]{0}', space=vmem, size = 0x1000, scoped, tag = 'input window, operand 2, single buffered']
    #allocation8 [shape = 'u8[32768]{0}', space=vmem, size = 0x8000, scoped, tag = 'output window, operand 0, single buffered']
    %8 = vsyncpa [#allocation3], 0
    %9 = vsyncpa [#allocation6], 0
    %10 = vsyncpa [#allocation4], 0
    // Predicated region
    $region2: #{tpu_custom_call.1} parent=1 // pred_check
      _
    $region3: #{tpu_custom_call.1} parent=1 // pred_check_branch
      %12 = sbr.rel (0) target = $region5
    $region4: #{tpu_custom_call.1} parent=1 // pred_region
      %14 = vsyncadd [#allocation3], 0
      %s15 = sshll.u32 %s0, 4
      %s16 = int_to_ptr.hbm [resolvable:$true] %s15
      %s17 = sshll.u32 [#allocation2], 4
      %s18 = int_to_ptr.vmem [resolvable:$true] %s17
      %23 = dma.hbm_to_vmem [thread:$0]  %s16, 1024, %s18, [#allocation3], 128, 128, 8
    $region5: #{tpu_custom_call.1} parent=1 // pred_fallthru
      _
    // Predicated region
    $region6: #{tpu_custom_call.1} parent=1 // pred_check
      _
    $region7: #{tpu_custom_call.1} parent=1 // pred_check_branch
      %25 = sbr.rel (0) target = $region9
    $region8: #{tpu_custom_call.1} parent=1 // pred_region
      %27 = vsyncadd [#allocation6], 0
      %s28 = sshll.u32 %s1, 4
      %s29 = int_to_ptr.hbm [resolvable:$true] %s28
      %s30 = sshll.u32 [#allocation5], 4
      %s31 = int_to_ptr.vmem [resolvable:$true] %s30
      %36 = dma.hbm_to_vmem [thread:$0]  %s29, 256, %s31, [#allocation6], 64, 64, 4
    $region9: #{tpu_custom_call.1} parent=1 // pred_fallthru
      _
    // Predicated region
    $region10: #{tpu_custom_call.1} parent=1 // pred_check
      _
    $region11: #{tpu_custom_call.1} parent=1 // pred_check_branch
      %38 = sbr.rel (0) target = $region13
    $region12: #{tpu_custom_call.1} parent=1 // pred_region
      %40 = vsyncadd [#allocation6], 0
      %s41 = sshll.u32 %s2, 4
      %s42 = int_to_ptr.hbm [resolvable:$true] %s41
      %s43 = sshll.u32 [#allocation7], 4
      %s44 = int_to_ptr.vmem [resolvable:$true] %s43
      %49 = dma.hbm_to_vmem [thread:$0]  %s42, 128, %s44, [#allocation6], 64, 64, 4
    $region13: #{tpu_custom_call.1} parent=1 // pred_fallthru
      _
    // Predicated region
    $region14: #{tpu_custom_call.1} parent=1 // pred_check
      _
    $region15: #{tpu_custom_call.1} parent=1 // pred_check_branch
      %51 = sbr.rel (0) target = $region17
    $region16: #{tpu_custom_call.1} parent=1 // pred_region
      %53 = dma.done [#allocation3], 1024
    $region17: #{tpu_custom_call.1} parent=1 // pred_fallthru
      _
    // Predicated region
    $region18: #{tpu_custom_call.1} parent=1 // pred_check
      _
    $region19: #{tpu_custom_call.1} parent=1 // pred_check_branch
      %55 = sbr.rel (0) target = $region21
    $region20: #{tpu_custom_call.1} parent=1 // pred_region
      %57 = dma.done [#allocation6], 256
    $region21: #{tpu_custom_call.1} parent=1 // pred_fallthru
      _
    // Predicated region
    $region22: #{tpu_custom_call.1} parent=1 // pred_check
      _
    $region23: #{tpu_custom_call.1} parent=1 // pred_check_branch
      %59 = sbr.rel (0) target = $region25
    $region24: #{tpu_custom_call.1} parent=1 // pred_region
      %61 = dma.done [#allocation6], 128
    $region25: #{tpu_custom_call.1} parent=1 // pred_fallthru
      _
    %v63 = vld [vmem:[#allocation2] sm:$0xff]
    %v64 = vld [vmem:[#allocation2 + $0x8] sm:$0xff]
    %v65 = vld [vmem:[#allocation2 + $0x10] sm:$0xff]
    %v66 = vld [vmem:[#allocation2 + $0x18] sm:$0xff]
    %v67 = vld [vmem:[#allocation2 + $0x20] sm:$0xff]
    %v68 = vld [vmem:[#allocation2 + $0x28] sm:$0xff]
    %v69 = vld [vmem:[#allocation2 + $0x30] sm:$0xff]
    %v70 = vld [vmem:[#allocation2 + $0x38] sm:$0xff]
    %v71 = vpack.c.bf16 %v63, %v63
    %v72 = vpack.c.bf16 %v64, %v64
    %v73 = vpack.c.bf16 %v65, %v65
    %v74 = vpack.c.bf16 %v66, %v66
    %v75 = vpack.c.bf16 %v67, %v67
    %v76 = vpack.c.bf16 %v68, %v68
    %v77 = vpack.c.bf16 %v69, %v69
    %v78 = vpack.c.bf16 %v70, %v70
    %v79 = vld [vmem:[#allocation5] sm:$0xf]
    %v80 = vld [vmem:[#allocation5 + $0x4] sm:$0xf]
    %v81 = vld [vmem:[#allocation5 + $0x8] sm:$0xf]
    %v82 = vld [vmem:[#allocation5 + $0xc] sm:$0xf]
    %v91 = vunpack.c.l.b16 %v71
    %v92 = vunpack.c.l.b16 %v72
    %v93 = vunpack.c.l.b16 %v73
    %v94 = vunpack.c.l.b16 %v74
    %v95 = vunpack.c.l.b16 %v75
    %v96 = vunpack.c.l.b16 %v76
    %v97 = vunpack.c.l.b16 %v77
    %v98 = vunpack.c.l.b16 %v78
    %v99 = vpack.c.b16 %v92, %v91
    %v100 = vpack.c.b16 %v94, %v93
    %v101 = vpack.c.b16 %v96, %v95
    %v102 = vpack.c.b16 %v98, %v97
    %v107 = vunpack.c.l.b16 %v79
    %v108 = vunpack.c.l.b16 %v80
    %v109 = vunpack.c.l.b16 %v81
    %v110 = vunpack.c.l.b16 %v82
    %v111 = vpack.c.b16 %v108, %v107
    %v112 = vpack.c.b16 %v110, %v109
    %vm115 = vcmask 261120
    %v117 = vsel %vm115, %v99, 0
    %v120 = vsel %vm115, %v100, 0
    %v123 = vsel %vm115, %v101, 0
    %v126 = vsel %vm115, %v102, 0
    %128 = vmatpush.bf16.msra.mxu0 0
    %129 = vmatpush.bf16.msra.mxu0 0
    %130 = vmatpush.bf16.msra.mxu0 0
    %131 = vmatpush.bf16.msra.mxu0 0
    %132 = vmatpush.bf16.msra.mxu0 0
    %133 = vmatpush.bf16.msra.mxu0 0
    %134 = vmatpush.bf16.msra.mxu0 %v112
    %135 = vmatpush.bf16.msra.mxu0 %v111
    %136 = vmatmul.bf16.gmra.mxu0 %v117
    %v137 = vpop.f32.mrf.mxu0
    %v138 = vadd.f32 0.0, %v137
    %v139 = vpop.f32.mrf.mxu0
    %v140 = vadd.f32 0.0, %v139
    %141 = vmatmul.bf16.gmra.mxu0 %v120
    %v142 = vpop.f32.mrf.mxu0
    %v143 = vadd.f32 0.0, %v142
    %v144 = vpop.f32.mrf.mxu0
    %v145 = vadd.f32 0.0, %v144
    %146 = vmatmul.bf16.gmra.mxu0 %v123
    %v147 = vpop.f32.mrf.mxu0
    %v148 = vadd.f32 0.0, %v147
    %v149 = vpop.f32.mrf.mxu0
    %v150 = vadd.f32 0.0, %v149
    %151 = vmatmul.bf16.gmra.mxu0 %v126
    %v152 = vpop.f32.mrf.mxu0
    %v153 = vadd.f32 0.0, %v152
    %v154 = vpop.f32.mrf.mxu0
    %v155 = vadd.f32 0.0, %v154
    %156 = vdwg.mxu0
    %v157 = vpack.c.bf16 %v138, %v138
    %v158 = vpack.c.bf16 %v140, %v140
    %v159 = vpack.c.bf16 %v143, %v143
    %v160 = vpack.c.bf16 %v145, %v145
    %v161 = vpack.c.bf16 %v148, %v148
    %v162 = vpack.c.bf16 %v150, %v150
    %v163 = vpack.c.bf16 %v153, %v153
    %v164 = vpack.c.bf16 %v155, %v155
    %v166 = vunpack.c.l.b16 %v157
    %v167 = vpack.c.b16 %v166, %v166
    %168 = vrot.lane.b32.xlu0 %v167, 112
    %v169 = vpop.permute.xlu0 %168
    %vm170 = vcmask 64512
    %v172 = vsel %vm170, %v157, 0
    %v175 = vsel %vm170, %v169, 0
    %177 = vmatpush.bf16.xpose.msra.mxu0 0
    %178 = vmatpush.bf16.xpose.msra.mxu0 0
    %179 = vmatpush.bf16.xpose.msra.mxu0 0
    %180 = vmatpush.bf16.xpose.msra.mxu0 0
    %181 = vmatpush.bf16.xpose.msra.mxu0 0
    %182 = vmatpush.bf16.xpose.msra.mxu0 0
    %183 = vmatpush.bf16.xpose.msra.mxu0 0
    %184 = vmatpush.bf16.xpose.msra.mxu0 %v175
    %185 = vmatmul.bf16.gmra.mxu0 %v172
    %v186 = vpop.f32.mrf.mxu0
    %v187 = vadd.f32 0.0, %v186
    %v188 = vpop.f32.mrf.mxu0
    %189 = vdwg.mxu0
    %v191 = vunpack.c.l.b16 %v158
    %v192 = vpack.c.b16 %v191, %v191
    %193 = vrot.lane.b32.xlu0 %v192, 112
    %v194 = vpop.permute.xlu0 %193
    %v196 = vsel %vm170, %v158, 0
    %v199 = vsel %vm170, %v194, 0
    %201 = vmatpush.bf16.xpose.msra.mxu0 0
    %202 = vmatpush.bf16.xpose.msra.mxu0 0
    %203 = vmatpush.bf16.xpose.msra.mxu0 0
    %204 = vmatpush.bf16.xpose.msra.mxu0 0
    %205 = vmatpush.bf16.xpose.msra.mxu0 0
    %206 = vmatpush.bf16.xpose.msra.mxu0 0
    %207 = vmatpush.bf16.xpose.msra.mxu0 0
    %208 = vmatpush.bf16.xpose.msra.mxu0 %v199
    %209 = vmatmul.bf16.gmra.mxu0 %v196
    %v210 = vpop.f32.mrf.mxu0
    %v211 = vadd.f32 0.0, %v210
    %v212 = vpop.f32.mrf.mxu0
    %213 = vdwg.mxu0
    %v215 = vunpack.c.l.b16 %v159
    %v216 = vpack.c.b16 %v215, %v215
    %217 = vrot.lane.b32.xlu0 %v216, 112
    %v218 = vpop.permute.xlu0 %217
    %v220 = vsel %vm170, %v159, 0
    %v223 = vsel %vm170, %v218, 0
    %225 = vmatpush.bf16.xpose.msra.mxu0 0
    %226 = vmatpush.bf16.xpose.msra.mxu0 0
    %227 = vmatpush.bf16.xpose.msra.mxu0 0
    %228 = vmatpush.bf16.xpose.msra.mxu0 0
    %229 = vmatpush.bf16.xpose.msra.mxu0 0
    %230 = vmatpush.bf16.xpose.msra.mxu0 0
    %231 = vmatpush.bf16.xpose.msra.mxu0 0
    %232 = vmatpush.bf16.xpose.msra.mxu0 %v223
    %233 = vmatmul.bf16.gmra.mxu0 %v220
    %v234 = vpop.f32.mrf.mxu0
    %v235 = vadd.f32 0.0, %v234
    %v236 = vpop.f32.mrf.mxu0
    %237 = vdwg.mxu0
    %v239 = vunpack.c.l.b16 %v160
    %v240 = vpack.c.b16 %v239, %v239
    %241 = vrot.lane.b32.xlu0 %v240, 112
    %v242 = vpop.permute.xlu0 %241
    %v244 = vsel %vm170, %v160, 0
    %v247 = vsel %vm170, %v242, 0
    %249 = vmatpush.bf16.xpose.msra.mxu0 0
    %250 = vmatpush.bf16.xpose.msra.mxu0 0
    %251 = vmatpush.bf16.xpose.msra.mxu0 0
    %252 = vmatpush.bf16.xpose.msra.mxu0 0
    %253 = vmatpush.bf16.xpose.msra.mxu0 0
    %254 = vmatpush.bf16.xpose.msra.mxu0 0
    %255 = vmatpush.bf16.xpose.msra.mxu0 0
    %256 = vmatpush.bf16.xpose.msra.mxu0 %v247
    %257 = vmatmul.bf16.gmra.mxu0 %v244
    %v258 = vpop.f32.mrf.mxu0
    %v259 = vadd.f32 0.0, %v258
    %v260 = vpop.f32.mrf.mxu0
    %261 = vdwg.mxu0
    %v263 = vunpack.c.l.b16 %v161
    %v264 = vpack.c.b16 %v263, %v263
    %265 = vrot.lane.b32.xlu0 %v264, 112
    %v266 = vpop.permute.xlu0 %265
    %v268 = vsel %vm170, %v161, 0
    %v271 = vsel %vm170, %v266, 0
    %273 = vmatpush.bf16.xpose.msra.mxu0 0
    %274 = vmatpush.bf16.xpose.msra.mxu0 0
    %275 = vmatpush.bf16.xpose.msra.mxu0 0
    %276 = vmatpush.bf16.xpose.msra.mxu0 0
    %277 = vmatpush.bf16.xpose.msra.mxu0 0
    %278 = vmatpush.bf16.xpose.msra.mxu0 0
    %279 = vmatpush.bf16.xpose.msra.mxu0 0
    %280 = vmatpush.bf16.xpose.msra.mxu0 %v271
    %281 = vmatmul.bf16.gmra.mxu0 %v268
    %v282 = vpop.f32.mrf.mxu0
    %v283 = vadd.f32 0.0, %v282
    %v284 = vpop.f32.mrf.mxu0
    %285 = vdwg.mxu0
    %v287 = vunpack.c.l.b16 %v162
    %v288 = vpack.c.b16 %v287, %v287
    %289 = vrot.lane.b32.xlu0 %v288, 112
    %v290 = vpop.permute.xlu0 %289
    %v292 = vsel %vm170, %v162, 0
    %v295 = vsel %vm170, %v290, 0
    %297 = vmatpush.bf16.xpose.msra.mxu0 0
    %298 = vmatpush.bf16.xpose.msra.mxu0 0
    %299 = vmatpush.bf16.xpose.msra.mxu0 0
    %300 = vmatpush.bf16.xpose.msra.mxu0 0
    %301 = vmatpush.bf16.xpose.msra.mxu0 0
    %302 = vmatpush.bf16.xpose.msra.mxu0 0
    %303 = vmatpush.bf16.xpose.msra.mxu0 0
    %304 = vmatpush.bf16.xpose.msra.mxu0 %v295
    %305 = vmatmul.bf16.gmra.mxu0 %v292
    %v306 = vpop.f32.mrf.mxu0
    %v307 = vadd.f32 0.0, %v306
    %v308 = vpop.f32.mrf.mxu0
    %309 = vdwg.mxu0
    %v311 = vunpack.c.l.b16 %v163
    %v312 = vpack.c.b16 %v311, %v311
    %313 = vrot.lane.b32.xlu0 %v312, 112
    %v314 = vpop.permute.xlu0 %313
    %v316 = vsel %vm170, %v163, 0
    %v319 = vsel %vm170, %v314, 0
    %321 = vmatpush.bf16.xpose.msra.mxu0 0
    %322 = vmatpush.bf16.xpose.msra.mxu0 0
    %323 = vmatpush.bf16.xpose.msra.mxu0 0
    %324 = vmatpush.bf16.xpose.msra.mxu0 0
    %325 = vmatpush.bf16.xpose.msra.mxu0 0
    %326 = vmatpush.bf16.xpose.msra.mxu0 0
    %327 = vmatpush.bf16.xpose.msra.mxu0 0
    %328 = vmatpush.bf16.xpose.msra.mxu0 %v319
    %329 = vmatmul.bf16.gmra.mxu0 %v316
    %v330 = vpop.f32.mrf.mxu0
    %v331 = vadd.f32 0.0, %v330
    %v332 = vpop.f32.mrf.mxu0
    %333 = vdwg.mxu0
    %v335 = vunpack.c.l.b16 %v164
    %v336 = vpack.c.b16 %v335, %v335
    %337 = vrot.lane.b32.xlu0 %v336, 112
    %v338 = vpop.permute.xlu0 %337
    %v340 = vsel %vm170, %v164, 0
    %v343 = vsel %vm170, %v338, 0
    %345 = vmatpush.bf16.xpose.msra.mxu0 0
    %346 = vmatpush.bf16.xpose.msra.mxu0 0
    %347 = vmatpush.bf16.xpose.msra.mxu0 0
    %348 = vmatpush.bf16.xpose.msra.mxu0 0
    %349 = vmatpush.bf16.xpose.msra.mxu0 0
    %350 = vmatpush.bf16.xpose.msra.mxu0 0
    %351 = vmatpush.bf16.xpose.msra.mxu0 0
    %352 = vmatpush.bf16.xpose.msra.mxu0 %v343
    %353 = vmatmul.bf16.gmra.mxu0 %v340
    %v354 = vpop.f32.mrf.mxu0
    %v355 = vadd.f32 0.0, %v354
    %v356 = vpop.f32.mrf.mxu0
    %357 = vdwg.mxu0
    %v358 = vsel %vm170, %v187, -inf
    %359 = vmax.xlane.f32.xlu0 %v358
    %v360 = vpop.xlane.xlu0 %359
    %v361 = vsel %vm170, %v211, -inf
    %362 = vmax.xlane.f32.xlu0 %v361
    %v363 = vpop.xlane.xlu0 %362
    %v364 = vsel %vm170, %v235, -inf
    %365 = vmax.xlane.f32.xlu0 %v364
    %v366 = vpop.xlane.xlu0 %365
    %v367 = vsel %vm170, %v259, -inf
    %368 = vmax.xlane.f32.xlu0 %v367
    %v369 = vpop.xlane.xlu0 %368
    %v370 = vsel %vm170, %v283, -inf
    %371 = vmax.xlane.f32.xlu0 %v370
    %v372 = vpop.xlane.xlu0 %371
    %v373 = vsel %vm170, %v307, -inf
    %374 = vmax.xlane.f32.xlu0 %v373
    %v375 = vpop.xlane.xlu0 %374
    %v376 = vsel %vm170, %v331, -inf
    %377 = vmax.xlane.f32.xlu0 %v376
    %v378 = vpop.xlane.xlu0 %377
    %v379 = vsel %vm170, %v355, -inf
    %380 = vmax.xlane.f32.xlu0 %v379
    %v381 = vpop.xlane.xlu0 %380
    %v382 = vsub.f32 %v187, %v360
    %v383 = vsub.f32 %v211, %v363
    %v384 = vsub.f32 %v235, %v366
    %v385 = vsub.f32 %v259, %v369
    %v386 = vsub.f32 %v283, %v372
    %v387 = vsub.f32 %v307, %v375
    %v388 = vsub.f32 %v331, %v378
    %v389 = vsub.f32 %v355, %v381
    %v390 = vmul.f32 %v382, 1.442695
    %v391 = vpow.pop %v390
    %v392 = vmul.f32 %v383, 1.442695
    %v393 = vpow.pop %v392
    %v394 = vmul.f32 %v384, 1.442695
    %v395 = vpow.pop %v394
    %v396 = vmul.f32 %v385, 1.442695
    %v397 = vpow.pop %v396
    %v398 = vmul.f32 %v386, 1.442695
    %v399 = vpow.pop %v398
    %v400 = vmul.f32 %v387, 1.442695
    %v401 = vpow.pop %v400
    %v402 = vmul.f32 %v388, 1.442695
    %v403 = vpow.pop %v402
    %v404 = vmul.f32 %v389, 1.442695
    %v405 = vpow.pop %v404
    %v406 = vsel %vm170, %v391, 0.0
    %407 = vadd.xlane.f32.xlu0 %v406
    %v408 = vpop.xlane.xlu0 %407
    %v409 = vsel %vm170, %v393, 0.0
    %410 = vadd.xlane.f32.xlu0 %v409
    %v411 = vpop.xlane.xlu0 %410
    %v412 = vsel %vm170, %v395, 0.0
    %413 = vadd.xlane.f32.xlu0 %v412
    %v414 = vpop.xlane.xlu0 %413
    %v415 = vsel %vm170, %v397, 0.0
    %416 = vadd.xlane.f32.xlu0 %v415
    %v417 = vpop.xlane.xlu0 %416
    %v418 = vsel %vm170, %v399, 0.0
    %419 = vadd.xlane.f32.xlu0 %v418
    %v420 = vpop.xlane.xlu0 %419
    %v421 = vsel %vm170, %v401, 0.0
    %422 = vadd.xlane.f32.xlu0 %v421
    %v423 = vpop.xlane.xlu0 %422
    %v424 = vsel %vm170, %v403, 0.0
    %425 = vadd.xlane.f32.xlu0 %v424
    %v426 = vpop.xlane.xlu0 %425
    %v427 = vsel %vm170, %v405, 0.0
    %428 = vadd.xlane.f32.xlu0 %v427
    %v429 = vpop.xlane.xlu0 %428
    %v430 = vpack.c.bf16 %v391, %v391
    %v431 = vpack.c.bf16 %v393, %v393
    %v432 = vpack.c.bf16 %v395, %v395
    %v433 = vpack.c.bf16 %v397, %v397
    %v434 = vpack.c.bf16 %v399, %v399
    %v435 = vpack.c.bf16 %v401, %v401
    %v436 = vpack.c.bf16 %v403, %v403
    %v437 = vpack.c.bf16 %v405, %v405
    %438 = vrot.lane.b32.xlu0 %v167, 96
    %v439 = vpop.permute.xlu0 %438
    %v441 = vsel %vm170, %v430, 0
    %vm443 = vcmask 1043456
    %v445 = vsel %vm443, %v439, 0
    %447 = vmatpush.bf16.msra.mxu0 0
    %448 = vmatpush.bf16.msra.mxu0 0
    %449 = vmatpush.bf16.msra.mxu0 0
    %450 = vmatpush.bf16.msra.mxu0 0
    %451 = vmatpush.bf16.msra.mxu0 0
    %452 = vmatpush.bf16.msra.mxu0 0
    %453 = vmatpush.bf16.msra.mxu0 0
    %454 = vmatpush.bf16.msra.mxu0 %v445
    %455 = vmatmul.bf16.gmra.mxu0 %v441
    %v456 = vpop.f32.mrf.mxu0
    %v457 = vadd.f32 0.0, %v456
    %v458 = vpop.f32.mrf.mxu0
    %459 = vdwg.mxu0
    %460 = vrot.lane.b32.xlu0 %v192, 96
    %v461 = vpop.permute.xlu0 %460
    %v463 = vsel %vm170, %v431, 0
    %v466 = vsel %vm443, %v461, 0
    %468 = vmatpush.bf16.msra.mxu0 0
    %469 = vmatpush.bf16.msra.mxu0 0
    %470 = vmatpush.bf16.msra.mxu0 0
    %471 = vmatpush.bf16.msra.mxu0 0
    %472 = vmatpush.bf16.msra.mxu0 0
    %473 = vmatpush.bf16.msra.mxu0 0
    %474 = vmatpush.bf16.msra.mxu0 0
    %475 = vmatpush.bf16.msra.mxu0 %v466
    %476 = vmatmul.bf16.gmra.mxu0 %v463
    %v477 = vpop.f32.mrf.mxu0
    %v478 = vadd.f32 0.0, %v477
    %v479 = vpop.f32.mrf.mxu0
    %480 = vdwg.mxu0
    %481 = vrot.lane.b32.xlu0 %v216, 96
    %v482 = vpop.permute.xlu0 %481
    %v484 = vsel %vm170, %v432, 0
    %v487 = vsel %vm443, %v482, 0
    %489 = vmatpush.bf16.msra.mxu0 0
    %490 = vmatpush.bf16.msra.mxu0 0
    %491 = vmatpush.bf16.msra.mxu0 0
    %492 = vmatpush.bf16.msra.mxu0 0
    %493 = vmatpush.bf16.msra.mxu0 0
    %494 = vmatpush.bf16.msra.mxu0 0
    %495 = vmatpush.bf16.msra.mxu0 0
    %496 = vmatpush.bf16.msra.mxu0 %v487
    %497 = vmatmul.bf16.gmra.mxu0 %v484
    %v498 = vpop.f32.mrf.mxu0
    %v499 = vadd.f32 0.0, %v498
    %v500 = vpop.f32.mrf.mxu0
    %501 = vdwg.mxu0
    %502 = vrot.lane.b32.xlu0 %v240, 96
    %v503 = vpop.permute.xlu0 %502
    %v505 = vsel %vm170, %v433, 0
    %v508 = vsel %vm443, %v503, 0
    %510 = vmatpush.bf16.msra.mxu0 0
    %511 = vmatpush.bf16.msra.mxu0 0
    %512 = vmatpush.bf16.msra.mxu0 0
    %513 = vmatpush.bf16.msra.mxu0 0
    %514 = vmatpush.bf16.msra.mxu0 0
    %515 = vmatpush.bf16.msra.mxu0 0
    %516 = vmatpush.bf16.msra.mxu0 0
    %517 = vmatpush.bf16.msra.mxu0 %v508
    %518 = vmatmul.bf16.gmra.mxu0 %v505
    %v519 = vpop.f32.mrf.mxu0
    %v520 = vadd.f32 0.0, %v519
    %v521 = vpop.f32.mrf.mxu0
    %522 = vdwg.mxu0
    %523 = vrot.lane.b32.xlu0 %v264, 96
    %v524 = vpop.permute.xlu0 %523
    %v526 = vsel %vm170, %v434, 0
    %v529 = vsel %vm443, %v524, 0
    %531 = vmatpush.bf16.msra.mxu0 0
    %532 = vmatpush.bf16.msra.mxu0 0
    %533 = vmatpush.bf16.msra.mxu0 0
    %534 = vmatpush.bf16.msra.mxu0 0
    %535 = vmatpush.bf16.msra.mxu0 0
    %536 = vmatpush.bf16.msra.mxu0 0
    %537 = vmatpush.bf16.msra.mxu0 0
    %538 = vmatpush.bf16.msra.mxu0 %v529
    %539 = vmatmul.bf16.gmra.mxu0 %v526
    %v540 = vpop.f32.mrf.mxu0
    %v541 = vadd.f32 0.0, %v540
    %v542 = vpop.f32.mrf.mxu0
    %543 = vdwg.mxu0
    %544 = vrot.lane.b32.xlu0 %v288, 96
    %v545 = vpop.permute.xlu0 %544
    %v547 = vsel %vm170, %v435, 0
    %v550 = vsel %vm443, %v545, 0
    %552 = vmatpush.bf16.msra.mxu0 0
    %553 = vmatpush.bf16.msra.mxu0 0
    %554 = vmatpush.bf16.msra.mxu0 0
    %555 = vmatpush.bf16.msra.mxu0 0
    %556 = vmatpush.bf16.msra.mxu0 0
    %557 = vmatpush.bf16.msra.mxu0 0
    %558 = vmatpush.bf16.msra.mxu0 0
    %559 = vmatpush.bf16.msra.mxu0 %v550
    %560 = vmatmul.bf16.gmra.mxu0 %v547
    %v561 = vpop.f32.mrf.mxu0
    %v562 = vadd.f32 0.0, %v561
    %v563 = vpop.f32.mrf.mxu0
    %564 = vdwg.mxu0
    %565 = vrot.lane.b32.xlu0 %v312, 96
    %v566 = vpop.permute.xlu0 %565
    %v568 = vsel %vm170, %v436, 0
    %v571 = vsel %vm443, %v566, 0
    %573 = vmatpush.bf16.msra.mxu0 0
    %574 = vmatpush.bf16.msra.mxu0 0
    %575 = vmatpush.bf16.msra.mxu0 0
    %576 = vmatpush.bf16.msra.mxu0 0
    %577 = vmatpush.bf16.msra.mxu0 0
    %578 = vmatpush.bf16.msra.mxu0 0
    %579 = vmatpush.bf16.msra.mxu0 0
    %580 = vmatpush.bf16.msra.mxu0 %v571
    %581 = vmatmul.bf16.gmra.mxu0 %v568
    %v582 = vpop.f32.mrf.mxu0
    %v583 = vadd.f32 0.0, %v582
    %v584 = vpop.f32.mrf.mxu0
    %585 = vdwg.mxu0
    %586 = vrot.lane.b32.xlu0 %v336, 96
    %v587 = vpop.permute.xlu0 %586
    %v589 = vsel %vm170, %v437, 0
    %v592 = vsel %vm443, %v587, 0
    %594 = vmatpush.bf16.msra.mxu0 0
    %595 = vmatpush.bf16.msra.mxu0 0
    %596 = vmatpush.bf16.msra.mxu0 0
    %597 = vmatpush.bf16.msra.mxu0 0
    %598 = vmatpush.bf16.msra.mxu0 0
    %599 = vmatpush.bf16.msra.mxu0 0
    %600 = vmatpush.bf16.msra.mxu0 0
    %601 = vmatpush.bf16.msra.mxu0 %v592
    %602 = vmatmul.bf16.gmra.mxu0 %v589
    %v603 = vpop.f32.mrf.mxu0
    %v604 = vadd.f32 0.0, %v603
    %v605 = vpop.f32.mrf.mxu0
    %606 = vdwg.mxu0
    %v607 = vrcp.pop %v408
    %v608 = vrcp.pop %v411
    %v609 = vrcp.pop %v414
    %v610 = vrcp.pop %v417
    %v611 = vrcp.pop %v420
    %v612 = vrcp.pop %v423
    %v613 = vrcp.pop %v426
    %v614 = vrcp.pop %v429
    %v615 = vmul.f32 %v457, %v607
    %v616 = vmul.f32 %v478, %v608
    %v617 = vmul.f32 %v499, %v609
    %v618 = vmul.f32 %v520, %v610
    %v619 = vmul.f32 %v541, %v611
    %v620 = vmul.f32 %v562, %v612
    %v621 = vmul.f32 %v583, %v613
    %v622 = vmul.f32 %v604, %v614
    %623 = vrot.lane.b32.xlu0 %v167, 120
    %v624 = vpop.permute.xlu0 %623
    %625 = vrot.lane.b32.xlu0 %v167, 104
    %v626 = vpop.permute.xlu0 %625
    %v628 = vsel %vm170, %v624, 0
    %v631 = vsel %vm170, %v626, 0
    %633 = vmatpush.bf16.xpose.msra.mxu0 0
    %634 = vmatpush.bf16.xpose.msra.mxu0 0
    %635 = vmatpush.bf16.xpose.msra.mxu0 0
    %636 = vmatpush.bf16.xpose.msra.mxu0 0
    %637 = vmatpush.bf16.xpose.msra.mxu0 0
    %638 = vmatpush.bf16.xpose.msra.mxu0 0
    %639 = vmatpush.bf16.xpose.msra.mxu0 0
    %640 = vmatpush.bf16.xpose.msra.mxu0 %v631
    %641 = vmatmul.bf16.gmra.mxu0 %v628
    %v642 = vpop.f32.mrf.mxu0
    %v643 = vadd.f32 0.0, %v642
    %v644 = vpop.f32.mrf.mxu0
    %645 = vdwg.mxu0
    %646 = vrot.lane.b32.xlu0 %v192, 120
    %v647 = vpop.permute.xlu0 %646
    %648 = vrot.lane.b32.xlu0 %v192, 104
    %v649 = vpop.permute.xlu0 %648
    %v651 = vsel %vm170, %v647, 0
    %v654 = vsel %vm170, %v649, 0
    %656 = vmatpush.bf16.xpose.msra.mxu0 0
    %657 = vmatpush.bf16.xpose.msra.mxu0 0
    %658 = vmatpush.bf16.xpose.msra.mxu0 0
    %659 = vmatpush.bf16.xpose.msra.mxu0 0
    %660 = vmatpush.bf16.xpose.msra.mxu0 0
    %661 = vmatpush.bf16.xpose.msra.mxu0 0
    %662 = vmatpush.bf16.xpose.msra.mxu0 0
    %663 = vmatpush.bf16.xpose.msra.mxu0 %v654
    %664 = vmatmul.bf16.gmra.mxu0 %v651
    %v665 = vpop.f32.mrf.mxu0
    %v666 = vadd.f32 0.0, %v665
    %v667 = vpop.f32.mrf.mxu0
    %668 = vdwg.mxu0
    %669 = vrot.lane.b32.xlu0 %v216, 120
    %v670 = vpop.permute.xlu0 %669
    %671 = vrot.lane.b32.xlu0 %v216, 104
    %v672 = vpop.permute.xlu0 %671
    %v674 = vsel %vm170, %v670, 0
    %v677 = vsel %vm170, %v672, 0
    %679 = vmatpush.bf16.xpose.msra.mxu0 0
    %680 = vmatpush.bf16.xpose.msra.mxu0 0
    %681 = vmatpush.bf16.xpose.msra.mxu0 0
    %682 = vmatpush.bf16.xpose.msra.mxu0 0
    %683 = vmatpush.bf16.xpose.msra.mxu0 0
    %684 = vmatpush.bf16.xpose.msra.mxu0 0
    %685 = vmatpush.bf16.xpose.msra.mxu0 0
    %686 = vmatpush.bf16.xpose.msra.mxu0 %v677
    %687 = vmatmul.bf16.gmra.mxu0 %v674
    %v688 = vpop.f32.mrf.mxu0
    %v689 = vadd.f32 0.0, %v688
    %v690 = vpop.f32.mrf.mxu0
    %691 = vdwg.mxu0
    %692 = vrot.lane.b32.xlu0 %v240, 120
    %v693 = vpop.permute.xlu0 %692
    %694 = vrot.lane.b32.xlu0 %v240, 104
    %v695 = vpop.permute.xlu0 %694
    %v697 = vsel %vm170, %v693, 0
    %v700 = vsel %vm170, %v695, 0
    %702 = vmatpush.bf16.xpose.msra.mxu0 0
    %703 = vmatpush.bf16.xpose.msra.mxu0 0
    %704 = vmatpush.bf16.xpose.msra.mxu0 0
    %705 = vmatpush.bf16.xpose.msra.mxu0 0
    %706 = vmatpush.bf16.xpose.msra.mxu0 0
    %707 = vmatpush.bf16.xpose.msra.mxu0 0
    %708 = vmatpush.bf16.xpose.msra.mxu0 0
    %709 = vmatpush.bf16.xpose.msra.mxu0 %v700
    %710 = vmatmul.bf16.gmra.mxu0 %v697
    %v711 = vpop.f32.mrf.mxu0
    %v712 = vadd.f32 0.0, %v711
    %v713 = vpop.f32.mrf.mxu0
    %714 = vdwg.mxu0
    %715 = vrot.lane.b32.xlu0 %v264, 120
    %v716 = vpop.permute.xlu0 %715
    %717 = vrot.lane.b32.xlu0 %v264, 104
    %v718 = vpop.permute.xlu0 %717
    %v720 = vsel %vm170, %v716, 0
    %v723 = vsel %vm170, %v718, 0
    %725 = vmatpush.bf16.xpose.msra.mxu0 0
    %726 = vmatpush.bf16.xpose.msra.mxu0 0
    %727 = vmatpush.bf16.xpose.msra.mxu0 0
    %728 = vmatpush.bf16.xpose.msra.mxu0 0
    %729 = vmatpush.bf16.xpose.msra.mxu0 0
    %730 = vmatpush.bf16.xpose.msra.mxu0 0
    %731 = vmatpush.bf16.xpose.msra.mxu0 0
    %732 = vmatpush.bf16.xpose.msra.mxu0 %v723
    %733 = vmatmul.bf16.gmra.mxu0 %v720
    %v734 = vpop.f32.mrf.mxu0
    %v735 = vadd.f32 0.0, %v734
    %v736 = vpop.f32.mrf.mxu0
    %737 = vdwg.mxu0
    %738 = vrot.lane.b32.xlu0 %v288, 120
    %v739 = vpop.permute.xlu0 %738
    %740 = vrot.lane.b32.xlu0 %v288, 104
    %v741 = vpop.permute.xlu0 %740
    %v743 = vsel %vm170, %v739, 0
    %v746 = vsel %vm170, %v741, 0
    %748 = vmatpush.bf16.xpose.msra.mxu0 0
    %749 = vmatpush.bf16.xpose.msra.mxu0 0
    %750 = vmatpush.bf16.xpose.msra.mxu0 0
    %751 = vmatpush.bf16.xpose.msra.mxu0 0
    %752 = vmatpush.bf16.xpose.msra.mxu0 0
    %753 = vmatpush.bf16.xpose.msra.mxu0 0
    %754 = vmatpush.bf16.xpose.msra.mxu0 0
    %755 = vmatpush.bf16.xpose.msra.mxu0 %v746
    %756 = vmatmul.bf16.gmra.mxu0 %v743
    %v757 = vpop.f32.mrf.mxu0
    %v758 = vadd.f32 0.0, %v757
    %v759 = vpop.f32.mrf.mxu0
    %760 = vdwg.mxu0
    %761 = vrot.lane.b32.xlu0 %v312, 120
    %v762 = vpop.permute.xlu0 %761
    %763 = vrot.lane.b32.xlu0 %v312, 104
    %v764 = vpop.permute.xlu0 %763
    %v766 = vsel %vm170, %v762, 0
    %v769 = vsel %vm170, %v764, 0
    %771 = vmatpush.bf16.xpose.msra.mxu0 0
    %772 = vmatpush.bf16.xpose.msra.mxu0 0
    %773 = vmatpush.bf16.xpose.msra.mxu0 0
    %774 = vmatpush.bf16.xpose.msra.mxu0 0
    %775 = vmatpush.bf16.xpose.msra.mxu0 0
    %776 = vmatpush.bf16.xpose.msra.mxu0 0
    %777 = vmatpush.bf16.xpose.msra.mxu0 0
    %778 = vmatpush.bf16.xpose.msra.mxu0 %v769
    %779 = vmatmul.bf16.gmra.mxu0 %v766
    %v780 = vpop.f32.mrf.mxu0
    %v781 = vadd.f32 0.0, %v780
    %v782 = vpop.f32.mrf.mxu0
    %783 = vdwg.mxu0
    %784 = vrot.lane.b32.xlu0 %v336, 120
    %v785 = vpop.permute.xlu0 %784
    %786 = vrot.lane.b32.xlu0 %v336, 104
    %v787 = vpop.permute.xlu0 %786
    %v789 = vsel %vm170, %v785, 0
    %v792 = vsel %vm170, %v787, 0
    %794 = vmatpush.bf16.xpose.msra.mxu0 0
    %795 = vmatpush.bf16.xpose.msra.mxu0 0
    %796 = vmatpush.bf16.xpose.msra.mxu0 0
    %797 = vmatpush.bf16.xpose.msra.mxu0 0
    %798 = vmatpush.bf16.xpose.msra.mxu0 0
    %799 = vmatpush.bf16.xpose.msra.mxu0 0
    %800 = vmatpush.bf16.xpose.msra.mxu0 0
    %801 = vmatpush.bf16.xpose.msra.mxu0 %v792
    %802 = vmatmul.bf16.gmra.mxu0 %v789
    %v803 = vpop.f32.mrf.mxu0
    %v804 = vadd.f32 0.0, %v803
    %v805 = vpop.f32.mrf.mxu0
    %806 = vdwg.mxu0
    %v807 = vsel %vm170, %v643, -inf
    %808 = vmax.xlane.f32.xlu0 %v807
    %v809 = vpop.xlane.xlu0 %808
    %v810 = vsel %vm170, %v666, -inf
    %811 = vmax.xlane.f32.xlu0 %v810
    %v812 = vpop.xlane.xlu0 %811
    %v813 = vsel %vm170, %v689, -inf
    %814 = vmax.xlane.f32.xlu0 %v813
    %v815 = vpop.xlane.xlu0 %814
    %v816 = vsel %vm170, %v712, -inf
    %817 = vmax.xlane.f32.xlu0 %v816
    %v818 = vpop.xlane.xlu0 %817
    %v819 = vsel %vm170, %v735, -inf
    %820 = vmax.xlane.f32.xlu0 %v819
    %v821 = vpop.xlane.xlu0 %820
    %v822 = vsel %vm170, %v758, -inf
    %823 = vmax.xlane.f32.xlu0 %v822
    %v824 = vpop.xlane.xlu0 %823
    %v825 = vsel %vm170, %v781, -inf
    %826 = vmax.xlane.f32.xlu0 %v825
    %v827 = vpop.xlane.xlu0 %826
    %v828 = vsel %vm170, %v804, -inf
    %829 = vmax.xlane.f32.xlu0 %v828
    %v830 = vpop.xlane.xlu0 %829
    %v831 = vsub.f32 %v643, %v809
    %v832 = vsub.f32 %v666, %v812
    %v833 = vsub.f32 %v689, %v815
    %v834 = vsub.f32 %v712, %v818
    %v835 = vsub.f32 %v735, %v821
    %v836 = vsub.f32 %v758, %v824
    %v837 = vsub.f32 %v781, %v827
    %v838 = vsub.f32 %v804, %v830
    %v839 = vmul.f32 %v831, 1.442695
    %v840 = vpow.pop %v839
    %v841 = vmul.f32 %v832, 1.442695
    %v842 = vpow.pop %v841
    %v843 = vmul.f32 %v833, 1.442695
    %v844 = vpow.pop %v843
    %v845 = vmul.f32 %v834, 1.442695
    %v846 = vpow.pop %v845
    %v847 = vmul.f32 %v835, 1.442695
    %v848 = vpow.pop %v847
    %v849 = vmul.f32 %v836, 1.442695
    %v850 = vpow.pop %v849
    %v851 = vmul.f32 %v837, 1.442695
    %v852 = vpow.pop %v851
    %v853 = vmul.f32 %v838, 1.442695
    %v854 = vpow.pop %v853
    %v855 = vsel %vm170, %v840, 0.0
    %856 = vadd.xlane.f32.xlu0 %v855
    %v857 = vpop.xlane.xlu0 %856
    %v858 = vsel %vm170, %v842, 0.0
    %859 = vadd.xlane.f32.xlu0 %v858
    %v860 = vpop.xlane.xlu0 %859
    %v861 = vsel %vm170, %v844, 0.0
    %862 = vadd.xlane.f32.xlu0 %v861
    %v863 = vpop.xlane.xlu0 %862
    %v864 = vsel %vm170, %v846, 0.0
    %865 = vadd.xlane.f32.xlu0 %v864
    %v866 = vpop.xlane.xlu0 %865
    %v867 = vsel %vm170, %v848, 0.0
    %868 = vadd.xlane.f32.xlu0 %v867
    %v869 = vpop.xlane.xlu0 %868
    %v870 = vsel %vm170, %v850, 0.0
    %871 = vadd.xlane.f32.xlu0 %v870
    %v872 = vpop.xlane.xlu0 %871
    %v873 = vsel %vm170, %v852, 0.0
    %874 = vadd.xlane.f32.xlu0 %v873
    %v875 = vpop.xlane.xlu0 %874
    %v876 = vsel %vm170, %v854, 0.0
    %877 = vadd.xlane.f32.xlu0 %v876
    %v878 = vpop.xlane.xlu0 %877
    %v879 = vpack.c.bf16 %v840, %v840
    %v880 = vpack.c.bf16 %v842, %v842
    %v881 = vpack.c.bf16 %v844, %v844
    %v882 = vpack.c.bf16 %v846, %v846
    %v883 = vpack.c.bf16 %v848, %v848
    %v884 = vpack.c.bf16 %v850, %v850
    %v885 = vpack.c.bf16 %v852, %v852
    %v886 = vpack.c.bf16 %v854, %v854
    %887 = vrot.lane.b32.xlu0 %v167, 88
    %v888 = vpop.permute.xlu0 %887
    %v890 = vsel %vm170, %v879, 0
    %v893 = vsel %vm443, %v888, 0
    %895 = vmatpush.bf16.msra.mxu0 0
    %896 = vmatpush.bf16.msra.mxu0 0
    %897 = vmatpush.bf16.msra.mxu0 0
    %898 = vmatpush.bf16.msra.mxu0 0
    %899 = vmatpush.bf16.msra.mxu0 0
    %900 = vmatpush.bf16.msra.mxu0 0
    %901 = vmatpush.bf16.msra.mxu0 0
    %902 = vmatpush.bf16.msra.mxu0 %v893
    %903 = vmatmul.bf16.gmra.mxu0 %v890
    %v904 = vpop.f32.mrf.mxu0
    %v905 = vadd.f32 0.0, %v904
    %v906 = vpop.f32.mrf.mxu0
    %907 = vdwg.mxu0
    %908 = vrot.lane.b32.xlu0 %v192, 88
    %v909 = vpop.permute.xlu0 %908
    %v911 = vsel %vm170, %v880, 0
    %v914 = vsel %vm443, %v909, 0
    %916 = vmatpush.bf16.msra.mxu0 0
    %917 = vmatpush.bf16.msra.mxu0 0
    %918 = vmatpush.bf16.msra.mxu0 0
    %919 = vmatpush.bf16.msra.mxu0 0
    %920 = vmatpush.bf16.msra.mxu0 0
    %921 = vmatpush.bf16.msra.mxu0 0
    %922 = vmatpush.bf16.msra.mxu0 0
    %923 = vmatpush.bf16.msra.mxu0 %v914
    %924 = vmatmul.bf16.gmra.mxu0 %v911
    %v925 = vpop.f32.mrf.mxu0
    %v926 = vadd.f32 0.0, %v925
    %v927 = vpop.f32.mrf.mxu0
    %928 = vdwg.mxu0
    %929 = vrot.lane.b32.xlu0 %v216, 88
    %v930 = vpop.permute.xlu0 %929
    %v932 = vsel %vm170, %v881, 0
    %v935 = vsel %vm443, %v930, 0
    %937 = vmatpush.bf16.msra.mxu0 0
    %938 = vmatpush.bf16.msra.mxu0 0
    %939 = vmatpush.bf16.msra.mxu0 0
    %940 = vmatpush.bf16.msra.mxu0 0
    %941 = vmatpush.bf16.msra.mxu0 0
    %942 = vmatpush.bf16.msra.mxu0 0
    %943 = vmatpush.bf16.msra.mxu0 0
    %944 = vmatpush.bf16.msra.mxu0 %v935
    %945 = vmatmul.bf16.gmra.mxu0 %v932
    %v946 = vpop.f32.mrf.mxu0
    %v947 = vadd.f32 0.0, %v946
    %v948 = vpop.f32.mrf.mxu0
    %949 = vdwg.mxu0
    %950 = vrot.lane.b32.xlu0 %v240, 88
    %v951 = vpop.permute.xlu0 %950
    %v953 = vsel %vm170, %v882, 0
    %v956 = vsel %vm443, %v951, 0
    %958 = vmatpush.bf16.msra.mxu0 0
    %959 = vmatpush.bf16.msra.mxu0 0
    %960 = vmatpush.bf16.msra.mxu0 0
    %961 = vmatpush.bf16.msra.mxu0 0
    %962 = vmatpush.bf16.msra.mxu0 0
    %963 = vmatpush.bf16.msra.mxu0 0
    %964 = vmatpush.bf16.msra.mxu0 0
    %965 = vmatpush.bf16.msra.mxu0 %v956
    %966 = vmatmul.bf16.gmra.mxu0 %v953
    %v967 = vpop.f32.mrf.mxu0
    %v968 = vadd.f32 0.0, %v967
    %v969 = vpop.f32.mrf.mxu0
    %970 = vdwg.mxu0
    %971 = vrot.lane.b32.xlu0 %v264, 88
    %v972 = vpop.permute.xlu0 %971
    %v974 = vsel %vm170, %v883, 0
    %v977 = vsel %vm443, %v972, 0
    %979 = vmatpush.bf16.msra.mxu0 0
    %980 = vmatpush.bf16.msra.mxu0 0
    %981 = vmatpush.bf16.msra.mxu0 0
    %982 = vmatpush.bf16.msra.mxu0 0
    %983 = vmatpush.bf16.msra.mxu0 0
    %984 = vmatpush.bf16.msra.mxu0 0
    %985 = vmatpush.bf16.msra.mxu0 0
    %986 = vmatpush.bf16.msra.mxu0 %v977
    %987 = vmatmul.bf16.gmra.mxu0 %v974
    %v988 = vpop.f32.mrf.mxu0
    %v989 = vadd.f32 0.0, %v988
    %v990 = vpop.f32.mrf.mxu0
    %991 = vdwg.mxu0
    %992 = vrot.lane.b32.xlu0 %v288, 88
    %v993 = vpop.permute.xlu0 %992
    %v995 = vsel %vm170, %v884, 0
    %v998 = vsel %vm443, %v993, 0
    %1000 = vmatpush.bf16.msra.mxu0 0
    %1001 = vmatpush.bf16.msra.mxu0 0
    %1002 = vmatpush.bf16.msra.mxu0 0
    %1003 = vmatpush.bf16.msra.mxu0 0
    %1004 = vmatpush.bf16.msra.mxu0 0
    %1005 = vmatpush.bf16.msra.mxu0 0
    %1006 = vmatpush.bf16.msra.mxu0 0
    %1007 = vmatpush.bf16.msra.mxu0 %v998
    %1008 = vmatmul.bf16.gmra.mxu0 %v995
    %v1009 = vpop.f32.mrf.mxu0
    %v1010 = vadd.f32 0.0, %v1009
    %v1011 = vpop.f32.mrf.mxu0
    %1012 = vdwg.mxu0
    %1013 = vrot.lane.b32.xlu0 %v312, 88
    %v1014 = vpop.permute.xlu0 %1013
    %v1016 = vsel %vm170, %v885, 0
    %v1019 = vsel %vm443, %v1014, 0
    %1021 = vmatpush.bf16.msra.mxu0 0
    %1022 = vmatpush.bf16.msra.mxu0 0
    %1023 = vmatpush.bf16.msra.mxu0 0
    %1024 = vmatpush.bf16.msra.mxu0 0
    %1025 = vmatpush.bf16.msra.mxu0 0
    %1026 = vmatpush.bf16.msra.mxu0 0
    %1027 = vmatpush.bf16.msra.mxu0 0
    %1028 = vmatpush.bf16.msra.mxu0 %v1019
    %1029 = vmatmul.bf16.gmra.mxu0 %v1016
    %v1030 = vpop.f32.mrf.mxu0
    %v1031 = vadd.f32 0.0, %v1030
    %v1032 = vpop.f32.mrf.mxu0
    %1033 = vdwg.mxu0
    %1034 = vrot.lane.b32.xlu0 %v336, 88
    %v1035 = vpop.permute.xlu0 %1034
    %v1037 = vsel %vm170, %v886, 0
    %v1040 = vsel %vm443, %v1035, 0
    %1042 = vmatpush.bf16.msra.mxu0 0
    %1043 = vmatpush.bf16.msra.mxu0 0
    %1044 = vmatpush.bf16.msra.mxu0 0
    %1045 = vmatpush.bf16.msra.mxu0 0
    %1046 = vmatpush.bf16.msra.mxu0 0
    %1047 = vmatpush.bf16.msra.mxu0 0
    %1048 = vmatpush.bf16.msra.mxu0 0
    %1049 = vmatpush.bf16.msra.mxu0 %v1040
    %1050 = vmatmul.bf16.gmra.mxu0 %v1037
    %v1051 = vpop.f32.mrf.mxu0
    %v1052 = vadd.f32 0.0, %v1051
    %v1053 = vpop.f32.mrf.mxu0
    %1054 = vdwg.mxu0
    %v1055 = vrcp.pop %v857
    %v1056 = vrcp.pop %v860
    %v1057 = vrcp.pop %v863
    %v1058 = vrcp.pop %v866
    %v1059 = vrcp.pop %v869
    %v1060 = vrcp.pop %v872
    %v1061 = vrcp.pop %v875
    %v1062 = vrcp.pop %v878
    %v1063 = vmul.f32 %v905, %v1055
    %v1064 = vmul.f32 %v926, %v1056
    %v1065 = vmul.f32 %v947, %v1057
    %v1066 = vmul.f32 %v968, %v1058
    %v1067 = vmul.f32 %v989, %v1059
    %v1068 = vmul.f32 %v1010, %v1060
    %v1069 = vmul.f32 %v1031, %v1061
    %v1070 = vmul.f32 %v1052, %v1062
    %1079 = vrot.lane.b32.xlu0 %v1063, 8
    %v1080 = vpop.permute.xlu0 %1079
    %1081 = vrot.lane.b32.xlu0 %v1064, 8
    %v1082 = vpop.permute.xlu0 %1081
    %1083 = vrot.lane.b32.xlu0 %v1065, 8
    %v1084 = vpop.permute.xlu0 %1083
    %1085 = vrot.lane.b32.xlu0 %v1066, 8
    %v1086 = vpop.permute.xlu0 %1085
    %1087 = vrot.lane.b32.xlu0 %v1067, 8
    %v1088 = vpop.permute.xlu0 %1087
    %1089 = vrot.lane.b32.xlu0 %v1068, 8
    %v1090 = vpop.permute.xlu0 %1089
    %1091 = vrot.lane.b32.xlu0 %v1069, 8
    %v1092 = vpop.permute.xlu0 %1091
    %1093 = vrot.lane.b32.xlu0 %v1070, 8
    %v1094 = vpop.permute.xlu0 %1093
    %v1103 = vsel %vm170, %v615, %v1080
    %v1104 = vsel %vm170, %v616, %v1082
    %v1105 = vsel %vm170, %v617, %v1084
    %v1106 = vsel %vm170, %v618, %v1086
    %v1107 = vsel %vm170, %v619, %v1088
    %v1108 = vsel %vm170, %v620, %v1090
    %v1109 = vsel %vm170, %v621, %v1092
    %v1110 = vsel %vm170, %v622, %v1094
    %v1111 = vpack.c.bf16 %v1104, %v1103
    %v1112 = vpack.c.bf16 %v1106, %v1105
    %v1113 = vpack.c.bf16 %v1108, %v1107
    %v1114 = vpack.c.bf16 %v1110, %v1109
    %v1115 = vld [vmem:[#allocation7] sm:$0xf]
    %v1116 = vld [vmem:[#allocation7 + $0x4] sm:$0xf]
    %v1119 = vunpack.c.l.b16 %v1115
    %v1120 = vunpack.c.l.b16 %v1116
    %v1121 = vpack.c.b16 %v1120, %v1119
    %vm1123 = vcmask 130048
    %v1125 = vsel %vm1123, %v1111, 0
    %v1128 = vsel %vm1123, %v1112, 0
    %v1131 = vsel %vm1123, %v1113, 0
    %v1134 = vsel %vm1123, %v1114, 0
    %1136 = vmatpush.bf16.msra.mxu0 0
    %1137 = vmatpush.bf16.msra.mxu0 0
    %1138 = vmatpush.bf16.msra.mxu0 0
    %1139 = vmatpush.bf16.msra.mxu0 0
    %1140 = vmatpush.bf16.msra.mxu0 0
    %1141 = vmatpush.bf16.msra.mxu0 0
    %1142 = vmatpush.bf16.msra.mxu0 0
    %1143 = vmatpush.bf16.msra.mxu0 %v1121
    %1144 = vmatmul.bf16.gmra.mxu0 %v1125
    %v1145 = vpop.f32.mrf.mxu0
    %v1146 = vadd.f32 0.0, %v1145
    %v1147 = vpop.f32.mrf.mxu0
    %v1148 = vadd.f32 0.0, %v1147
    %1149 = vmatmul.bf16.gmra.mxu0 %v1128
    %v1150 = vpop.f32.mrf.mxu0
    %v1151 = vadd.f32 0.0, %v1150
    %v1152 = vpop.f32.mrf.mxu0
    %v1153 = vadd.f32 0.0, %v1152
    %1154 = vmatmul.bf16.gmra.mxu0 %v1131
    %v1155 = vpop.f32.mrf.mxu0
    %v1156 = vadd.f32 0.0, %v1155
    %v1157 = vpop.f32.mrf.mxu0
    %v1158 = vadd.f32 0.0, %v1157
    %1159 = vmatmul.bf16.gmra.mxu0 %v1134
    %v1160 = vpop.f32.mrf.mxu0
    %v1161 = vadd.f32 0.0, %v1160
    %v1162 = vpop.f32.mrf.mxu0
    %v1163 = vadd.f32 0.0, %v1162
    %1164 = vdwg.mxu0
    %v1165 = vadd.f32 %v63, %v1146
    %v1166 = vadd.f32 %v64, %v1148
    %v1167 = vadd.f32 %v65, %v1151
    %v1168 = vadd.f32 %v66, %v1153
    %v1169 = vadd.f32 %v67, %v1156
    %v1170 = vadd.f32 %v68, %v1158
    %v1171 = vadd.f32 %v69, %v1161
    %v1172 = vadd.f32 %v70, %v1163
    %v1173 = vsel %vm115, %v1165, 0.0
    %1174 = vadd.xlane.f32.xlu0 %v1173
    %v1175 = vpop.xlane.xlu0 %1174
    %v1176 = vsel %vm115, %v1166, 0.0
    %1177 = vadd.xlane.f32.xlu0 %v1176
    %v1178 = vpop.xlane.xlu0 %1177
    %v1179 = vsel %vm115, %v1167, 0.0
    %1180 = vadd.xlane.f32.xlu0 %v1179
    %v1181 = vpop.xlane.xlu0 %1180
    %v1182 = vsel %vm115, %v1168, 0.0
    %1183 = vadd.xlane.f32.xlu0 %v1182
    %v1184 = vpop.xlane.xlu0 %1183
    %v1185 = vsel %vm115, %v1169, 0.0
    %1186 = vadd.xlane.f32.xlu0 %v1185
    %v1187 = vpop.xlane.xlu0 %1186
    %v1188 = vsel %vm115, %v1170, 0.0
    %1189 = vadd.xlane.f32.xlu0 %v1188
    %v1190 = vpop.xlane.xlu0 %1189
    %v1191 = vsel %vm115, %v1171, 0.0
    %1192 = vadd.xlane.f32.xlu0 %v1191
    %v1193 = vpop.xlane.xlu0 %1192
    %v1194 = vsel %vm115, %v1172, 0.0
    %1195 = vadd.xlane.f32.xlu0 %v1194
    %v1196 = vpop.xlane.xlu0 %1195
    %v1197 = vrcp.pop 32.0
    %v1198 = vmul.f32 32.0, %v1197
    %v1199 = vsub.f32 1.0, %v1198
    %v1200 = vmul.f32 %v1197, %v1199
    %v1201 = vadd.f32 %v1197, %v1200
    %vm1202 = vweird.f32 %v1197
    %v1203 = vsel %vm1202, %v1197, %v1201
    %v1204 = vmul.f32 %v1175, %v1203
    %v1205 = vmul.f32 %v1178, %v1203
    %v1206 = vmul.f32 %v1181, %v1203
    %v1207 = vmul.f32 %v1184, %v1203
    %v1208 = vmul.f32 %v1187, %v1203
    %v1209 = vmul.f32 %v1190, %v1203
    %v1210 = vmul.f32 %v1193, %v1203
    %v1211 = vmul.f32 %v1196, %v1203
    %v1212 = vsub.f32 %v1165, %v1204
    %v1213 = vsub.f32 %v1166, %v1205
    %v1214 = vsub.f32 %v1167, %v1206
    %v1215 = vsub.f32 %v1168, %v1207
    %v1216 = vsub.f32 %v1169, %v1208
    %v1217 = vsub.f32 %v1170, %v1209
    %v1218 = vsub.f32 %v1171, %v1210
    %v1219 = vsub.f32 %v1172, %v1211
    %v1220 = vmul.f32 %v1212, %v1212
    %v1221 = vmul.f32 %v1213, %v1213
    %v1222 = vmul.f32 %v1214, %v1214
    %v1223 = vmul.f32 %v1215, %v1215
    %v1224 = vmul.f32 %v1216, %v1216
    %v1225 = vmul.f32 %v1217, %v1217
    %v1226 = vmul.f32 %v1218, %v1218
    %v1227 = vmul.f32 %v1219, %v1219
    %v1228 = vsel %vm115, %v1220, 0.0
    %1229 = vadd.xlane.f32.xlu0 %v1228
    %v1230 = vpop.xlane.xlu0 %1229
    %v1231 = vsel %vm115, %v1221, 0.0
    %1232 = vadd.xlane.f32.xlu0 %v1231
    %v1233 = vpop.xlane.xlu0 %1232
    %v1234 = vsel %vm115, %v1222, 0.0
    %1235 = vadd.xlane.f32.xlu0 %v1234
    %v1236 = vpop.xlane.xlu0 %1235
    %v1237 = vsel %vm115, %v1223, 0.0
    %1238 = vadd.xlane.f32.xlu0 %v1237
    %v1239 = vpop.xlane.xlu0 %1238
    %v1240 = vsel %vm115, %v1224, 0.0
    %1241 = vadd.xlane.f32.xlu0 %v1240
    %v1242 = vpop.xlane.xlu0 %1241
    %v1243 = vsel %vm115, %v1225, 0.0
    %1244 = vadd.xlane.f32.xlu0 %v1243
    %v1245 = vpop.xlane.xlu0 %1244
    %v1246 = vsel %vm115, %v1226, 0.0
    %1247 = vadd.xlane.f32.xlu0 %v1246
    %v1248 = vpop.xlane.xlu0 %1247
    %v1249 = vsel %vm115, %v1227, 0.0
    %1250 = vadd.xlane.f32.xlu0 %v1249
    %v1251 = vpop.xlane.xlu0 %1250
    %v1252 = vmul.f32 %v1230, %v1203
    %v1253 = vmul.f32 %v1233, %v1203
    %v1254 = vmul.f32 %v1236, %v1203
    %v1255 = vmul.f32 %v1239, %v1203
    %v1256 = vmul.f32 %v1242, %v1203
    %v1257 = vmul.f32 %v1245, %v1203
    %v1258 = vmul.f32 %v1248, %v1203
    %v1259 = vmul.f32 %v1251, %v1203
    %v1260 = vadd.f32 %v1252, 1e-05
    %v1261 = vadd.f32 %v1253, 1e-05
    %v1262 = vadd.f32 %v1254, 1e-05
    %v1263 = vadd.f32 %v1255, 1e-05
    %v1264 = vadd.f32 %v1256, 1e-05
    %v1265 = vadd.f32 %v1257, 1e-05
    %v1266 = vadd.f32 %v1258, 1e-05
    %v1267 = vadd.f32 %v1259, 1e-05
    %v1268 = vrsqrt.pop %v1260
    %v1269 = vmul.f32 %v1268, %v1260
    %v1270 = vmul.f32 %v1269, %v1268
    %v1271 = vmul.f32 0.5, %v1270
    %v1272 = vsub.f32 1.5, %v1271
    %v1273 = vmul.f32 %v1268, %v1272
    %vm1274 = vweird.f32 %v1260
    %vm1275 = vweird.f32 %v1268
    %vm1276 = vmor %vm1274, %vm1275
    %v1277 = vsel %vm1276, %v1268, %v1273
    %v1278 = vrsqrt.pop %v1261
    %v1279 = vmul.f32 %v1278, %v1261
    %v1280 = vmul.f32 %v1279, %v1278
    %v1281 = vmul.f32 0.5, %v1280
    %v1282 = vsub.f32 1.5, %v1281
    %v1283 = vmul.f32 %v1278, %v1282
    %vm1284 = vweird.f32 %v1261
    %vm1285 = vweird.f32 %v1278
    %vm1286 = vmor %vm1284, %vm1285
    %v1287 = vsel %vm1286, %v1278, %v1283
    %v1288 = vrsqrt.pop %v1262
    %v1289 = vmul.f32 %v1288, %v1262
    %v1290 = vmul.f32 %v1289, %v1288
    %v1291 = vmul.f32 0.5, %v1290
    %v1292 = vsub.f32 1.5, %v1291
    %v1293 = vmul.f32 %v1288, %v1292
    %vm1294 = vweird.f32 %v1262
    %vm1295 = vweird.f32 %v1288
    %vm1296 = vmor %vm1294, %vm1295
    %v1297 = vsel %vm1296, %v1288, %v1293
    %v1298 = vrsqrt.pop %v1263
    %v1299 = vmul.f32 %v1298, %v1263
    %v1300 = vmul.f32 %v1299, %v1298
    %v1301 = vmul.f32 0.5, %v1300
    %v1302 = vsub.f32 1.5, %v1301
    %v1303 = vmul.f32 %v1298, %v1302
    %vm1304 = vweird.f32 %v1263
    %vm1305 = vweird.f32 %v1298
    %vm1306 = vmor %vm1304, %vm1305
    %v1307 = vsel %vm1306, %v1298, %v1303
    %v1308 = vrsqrt.pop %v1264
    %v1309 = vmul.f32 %v1308, %v1264
    %v1310 = vmul.f32 %v1309, %v1308
    %v1311 = vmul.f32 0.5, %v1310
    %v1312 = vsub.f32 1.5, %v1311
    %v1313 = vmul.f32 %v1308, %v1312
    %vm1314 = vweird.f32 %v1264
    %vm1315 = vweird.f32 %v1308
    %vm1316 = vmor %vm1314, %vm1315
    %v1317 = vsel %vm1316, %v1308, %v1313
    %v1318 = vrsqrt.pop %v1265
    %v1319 = vmul.f32 %v1318, %v1265
    %v1320 = vmul.f32 %v1319, %v1318
    %v1321 = vmul.f32 0.5, %v1320
    %v1322 = vsub.f32 1.5, %v1321
    %v1323 = vmul.f32 %v1318, %v1322
    %vm1324 = vweird.f32 %v1265
    %vm1325 = vweird.f32 %v1318
    %vm1326 = vmor %vm1324, %vm1325
    %v1327 = vsel %vm1326, %v1318, %v1323
    %v1328 = vrsqrt.pop %v1266
    %v1329 = vmul.f32 %v1328, %v1266
    %v1330 = vmul.f32 %v1329, %v1328
    %v1331 = vmul.f32 0.5, %v1330
    %v1332 = vsub.f32 1.5, %v1331
    %v1333 = vmul.f32 %v1328, %v1332
    %vm1334 = vweird.f32 %v1266
    %vm1335 = vweird.f32 %v1328
    %vm1336 = vmor %vm1334, %vm1335
    %v1337 = vsel %vm1336, %v1328, %v1333
    %v1338 = vrsqrt.pop %v1267
    %v1339 = vmul.f32 %v1338, %v1267
    %v1340 = vmul.f32 %v1339, %v1338
    %v1341 = vmul.f32 0.5, %v1340
    %v1342 = vsub.f32 1.5, %v1341
    %v1343 = vmul.f32 %v1338, %v1342
    %vm1344 = vweird.f32 %v1267
    %vm1345 = vweird.f32 %v1338
    %vm1346 = vmor %vm1344, %vm1345
    %v1347 = vsel %vm1346, %v1338, %v1343
    %v1348 = vmul.f32 %v1212, %v1277
    %v1349 = vmul.f32 %v1213, %v1287
    %v1350 = vmul.f32 %v1214, %v1297
    %v1351 = vmul.f32 %v1215, %v1307
    %v1352 = vmul.f32 %v1216, %v1317
    %v1353 = vmul.f32 %v1217, %v1327
    %v1354 = vmul.f32 %v1218, %v1337
    %v1355 = vmul.f32 %v1219, %v1347
    %1356 = vst.msk [vmem:[#allocation8] sm:$0xff] %vm115, %v1348
    %1357 = vst.msk [vmem:[#allocation8 + $0x8] sm:$0xff] %vm115, %v1349
    %1358 = vst.msk [vmem:[#allocation8 + $0x10] sm:$0xff] %vm115, %v1350
    %1359 = vst.msk [vmem:[#allocation8 + $0x18] sm:$0xff] %vm115, %v1351
    %1360 = vst.msk [vmem:[#allocation8 + $0x20] sm:$0xff] %vm115, %v1352
    %1361 = vst.msk [vmem:[#allocation8 + $0x28] sm:$0xff] %vm115, %v1353
    %1362 = vst.msk [vmem:[#allocation8 + $0x30] sm:$0xff] %vm115, %v1354
    %1363 = vst.msk [vmem:[#allocation8 + $0x38] sm:$0xff] %vm115, %v1355
    // Predicated region
    $region26: #{tpu_custom_call.1} parent=1 // pred_check
      _
    $region27: #{tpu_custom_call.1} parent=1 // pred_check_branch
      %1365 = sbr.rel (0) target = $region29
    $region28: #{tpu_custom_call.1} parent=1 // pred_region
      %1367 = vsyncadd [#allocation4], 0
      %s1368 = sshll.u32 [#allocation8], 4
      %s1369 = int_to_ptr.vmem [resolvable:$true] %s1368
      %s1370 = sshll.u32 %s3, 4
      %s1371 = int_to_ptr.hbm [resolvable:$true] %s1370
      %1376 = dma.vmem_to_hbm [thread:$0]  %s1369, 1024, %s1371, [#allocation4], 128, 128, 8
    $region29: #{tpu_custom_call.1} parent=1 // pred_fallthru
      _
    // Predicated region
    $region30: #{tpu_custom_call.1} parent=1 // pred_check
      _
    $region31: #{tpu_custom_call.1} parent=1 // pred_check_branch
      %1378 = sbr.rel (0) target = $region33
    $region32: #{tpu_custom_call.1} parent=1 // pred_region
      %1380 = dma.done [#allocation4], 1024
    $region33: #{tpu_custom_call.1} parent=1 // pred_fallthru
      _
    %1381 = vsyncpa [#allocation3], 1
    %1382 = vsyncpa [#allocation6], 1
    %1383 = vsyncpa [#allocation4], 1

</llo_original>
